<compile_context>
chip_gen: v7x
topology: tpu7x:2x2x1
jax: 0.10.0
libtpu: 0.0.40
codegen_flags: <defaults>
</compile_context>

<pallas_src>
import math

import jax
import jax.numpy as jnp
from jax import lax
from jax.experimental import pallas as pl
from jax.experimental.pallas import tpu as pltpu

_MIB = 1024 * 1024
_INV_SQRT2 = 1.0 / math.sqrt(2.0)


# ---------------------------------------------------------------------------
# Kernels
# ---------------------------------------------------------------------------
def _mlp_kernel_acc(x_ref, w_up_ref, b_up_ref, w_down_ref, b_down_ref, o_ref,
                    acc_ref):
    """Variant with a dedicated f32 accumulator (used when out dtype != f32)."""
    h_idx = pl.program_id(1)

    @pl.when(h_idx == 0)
    def _():
        # Initialize the accumulator with the down-proj bias (broadcast rows).
        acc_ref[...] = jnp.broadcast_to(b_down_ref[...], acc_ref.shape)

    # up projection on the (tm, th) slab -> f32 accumulation on the MXU
    h = jnp.dot(x_ref[...], w_up_ref[...], preferred_element_type=jnp.float32)
    h = h + b_up_ref[...]                                   # (tm, th) + (1, th)
    # exact GELU (nn.GELU(approximate='none')): 0.5*x*(1+erf(x/sqrt(2))), f32
    h = 0.5 * h * (1.0 + lax.erf(h * _INV_SQRT2))
    # partial down projection for this hidden tile, accumulate in f32
    acc_ref[...] += jnp.dot(h.astype(w_down_ref.dtype), w_down_ref[...],
                            preferred_element_type=jnp.float32)

    @pl.when(h_idx == pl.num_programs(1) - 1)
    def _():
        o_ref[...] = acc_ref[...].astype(o_ref.dtype)


def _mlp_kernel_inplace(x_ref, w_up_ref, b_up_ref, w_down_ref, b_down_ref,
                        o_ref):
    """Variant that accumulates directly into the resident f32 output block."""
    h_idx = pl.program_id(1)

    @pl.when(h_idx == 0)
    def _():
        o_ref[...] = jnp.broadcast_to(b_down_ref[...], o_ref.shape)

    h = jnp.dot(x_ref[...], w_up_ref[...], preferred_element_type=jnp.float32)
    h = h + b_up_ref[...]
    h = 0.5 * h * (1.0 + lax.erf(h * _INV_SQRT2))
    o_ref[...] += jnp.dot(h.astype(w_down_ref.dtype), w_down_ref[...],
                          preferred_element_type=jnp.float32)


# ---------------------------------------------------------------------------
# Wrapper
# ---------------------------------------------------------------------------
def _round_up(a, m):
    return (a + m - 1) // m * m


def _hw_config():
    """(vmem_capacity_bytes, num_tensorcores, generation) with safe fallbacks."""
    vmem = None
    try:
        vmem = int(pltpu.get_tpu_info().vmem_capacity_bytes)
    except Exception:
        vmem = None
    kind = ""
    try:
        kind = jax.devices()[0].device_kind.lower()
    except Exception:
        pass
    if "v7" in kind or "7x" in kind:
        gen = "v7x"
    elif "v6" in kind:
        gen = "v6e"
    elif "v5" in kind:
        gen = "v5e"
    else:
        gen = None
    if vmem is None:
        # Conservative fallback: assume the small-VMEM part if unknown.
        vmem = 64 * _MIB if gen in ("v7x", None) else 128 * _MIB
    num_tc = 2 if gen == "v7x" else 1
    return vmem, num_tc, gen


def _maybe_pad2d(w, pad_rows, pad_cols, dtype):
    if pad_rows or pad_cols:
        w = jnp.pad(w, ((0, pad_rows), (0, pad_cols)))
    if w.dtype != dtype:
        w = w.astype(dtype)
    return w


def mpt_mlp(x, w_up, b_up, w_down, b_down, *, tm=None, th=None,
            compute_dtype=None):
    """MPTMLP forward.

    x: (B, S, D).  w_up: (D, H), b_up: (H,), w_down: (H, D), b_down: (D,)
    (weights stored as (in_features, out_features), i.e. transposed vs torch).
    compute_dtype: dtype fed to the MXU (default bfloat16 — full MXU rate and
    half the weight HBM traffic); accumulation and GELU are always f32;
    output dtype follows x.

    For production MPT sizes, pre-cast the weights to `compute_dtype` once
    outside this function so the wrapper's pad/cast stage is a no-op.
    """
    B, S, D = x.shape
    H = w_up.shape[1]
    M = B * S
    out_dtype = jnp.dtype(x.dtype)
    if compute_dtype is None:
        compute_dtype = jnp.bfloat16
    compute_dtype = jnp.dtype(compute_dtype)

    vmem_bytes, num_tc, gen = _hw_config()

    # ---- generation-aware tile defaults -----------------------------------
    Dp = _round_up(max(D, 128), 128)

    if th is None:
        th = {"v5e": 512, "v6e": 1024, "v7x": 512}.get(gen, 512)
        th = min(th, _round_up(H, 128))
    else:
        th = _round_up(th, 128)

    if tm is None:
        tm = {"v5e": 512, "v6e": 1024, "v7x": 512}.get(gen, 512)
        tm = min(tm, _round_up(M, 8))
    else:
        tm = _round_up(tm, 8)
    # Split the M axis across TensorCores only when there are >= 2 of them.
    if num_tc >= 2 and _round_up(M, tm) // tm < num_tc and tm > 8:
        tm = max(8, _round_up(tm // num_tc, 8))

    # ---- VMEM budget -------------------------------------------------------
    if vmem_bytes >= 96 * _MIB:
        vmem_limit = 100 * _MIB            # 128 MiB parts (v5e / v6e)
    else:
        vmem_limit = max(min(vmem_bytes - 8 * _MIB, vmem_bytes), 32 * _MIB)

    cd_b = compute_dtype.itemsize
    out_b = out_dtype.itemsize
    use_scratch = out_dtype != jnp.dtype(jnp.float32)
    single_x = (gen == "v7x") or (vmem_bytes < 96 * _MIB)

    def _vmem_need(tm_, th_):
        need = tm_ * Dp * cd_b * (1 if single_x else 2)    # x tiles
        need += Dp * th_ * cd_b * 2                        # up-proj weight tiles
        need += th_ * Dp * cd_b * 2                        # down-proj weight tiles
        need += (th_ + Dp) * 4 * 2                         # bias tiles
        need += tm_ * Dp * out_b * 2                       # output tiles
        if use_scratch:
            need += tm_ * Dp * 4                           # f32 accumulator
        return need

    # Safety shrink (kicks in only for unusually large user-requested tiles).
    while _vmem_need(tm, th) > int(0.85 * vmem_limit):
        if tm >= 256:
            tm = max(8, _round_up(tm // 2, 8))
        elif th >= 256:
            th = max(128, _round_up(th // 2, 128))
        else:
            break

    Hp = _round_up(H, th)
    Mp = _round_up(M, tm)

    # ---- operand prep (skipped when already aligned & in the right dtype) --
    f32 = jnp.float32
    x2 = x.reshape(M, D)
    if Mp != M or Dp != D:
        x2 = jnp.pad(x2, ((0, Mp - M), (0, Dp - D)))
    if x2.dtype != compute_dtype:
        x2 = x2.astype(compute_dtype)

    w_up_p = _maybe_pad2d(w_up, Dp - D, Hp - H, compute_dtype)
    w_dn_p = _maybe_pad2d(w_down, Hp - H, Dp - D, compute_dtype)
    b_up_p = (b_up if Hp == H else jnp.pad(b_up, (0, Hp - H)))
    b_up_p = b_up_p.astype(f32).reshape(1, Hp)
    b_dn_p = (b_down if Dp == D else jnp.pad(b_down, (0, Dp - D)))
    b_dn_p = b_dn_p.astype(f32).reshape(1, Dp)

    grid = (Mp // tm, Hp // th)
    n_m_tiles = grid[0]

    def nbytes(a):
        return a.size * a.dtype.itemsize

    weight_bytes = (nbytes(w_up_p) + nbytes(w_dn_p)
                    + nbytes(b_up_p) + nbytes(b_dn_p))
    cost = pl.CostEstimate(
        flops=4 * Mp * Dp * Hp,                       # two matmuls, 2*M*D*H each
        transcendentals=Mp * Hp,                      # one erf per hidden element
        bytes_accessed=(nbytes(x2)
                        + n_m_tiles * weight_bytes    # weights re-streamed per M tile
                        + Mp * Dp * out_b),
    )

    # ---- specs -------------------------------------------------------------
    if single_x:
        # Block index of x is constant along h: a single buffer suffices and
        # frees tm*Dp*cd bytes of VMEM on the 64 MiB part.
        x_spec = pl.BlockSpec((tm, Dp), lambda i, h: (i, 0),
                              pipeline_mode=pl.Buffered(1))
    else:
        x_spec = pl.BlockSpec((tm, Dp), lambda i, h: (i, 0))

    in_specs = [
        x_spec,                                               # x rows
        pl.BlockSpec((Dp, th), lambda i, h: (0, h)),          # up-proj weight tile
        pl.BlockSpec((1, th), lambda i, h: (0, h)),           # up-proj bias tile
        pl.BlockSpec((th, Dp), lambda i, h: (h, 0)),          # down-proj weight tile
        pl.BlockSpec((1, Dp), lambda i, h: (0, 0),            # down-proj bias: const
                     pipeline_mode=pl.Buffered(1)),
    ]
    out_spec = pl.BlockSpec((tm, Dp), lambda i, h: (i, 0))

    if use_scratch:
        kernel = _mlp_kernel_acc
        scratch_shapes = [pltpu.VMEM((tm, Dp), jnp.float32)]
    else:
        # f32 output: accumulate directly into the resident output block.
        kernel = _mlp_kernel_inplace
        scratch_shapes = []

    out = pl.pallas_call(
        kernel,
        out_shape=jax.ShapeDtypeStruct((Mp, Dp), out_dtype),
        grid_spec=pltpu.PrefetchScalarGridSpec(
            num_scalar_prefetch=0,
            grid=grid,
            in_specs=in_specs,
            out_specs=out_spec,
            scratch_shapes=scratch_shapes,
        ),
        compiler_params=pltpu.CompilerParams(
            dimension_semantics=("parallel", "arbitrary"),
            vmem_limit_bytes=int(vmem_limit),
        ),
        cost_estimate=cost,
    )(x2, w_up_p, b_up_p, w_dn_p, b_dn_p)

    return out[:M, :D].reshape(B, S, D)


# ---------------------------------------------------------------------------
# Demo / correctness check
# ---------------------------------------------------------------------------
if __name__ == "__main__":
    # MPTMLP(d_model=32, expansion_ratio=4)
    d_model = 32
    expansion_ratio = 4
    hidden = expansion_ratio * d_model
    B, S = 2, 8

    key = jax.random.PRNGKey(0)
    kx, k1, k2, k3, k4 = jax.random.split(key, 5)

    x = jax.random.normal(kx, (B, S, d_model), dtype=jnp.float32)

    # Deterministic parameter init (Linear-like uniform bounds), stored as
    # (in_features, out_features), i.e. transposed from PyTorch's (out, in).
    bound_up = 1.0 / math.sqrt(d_model)
    w_up = jax.random.uniform(k1, (d_model, hidden), jnp.float32,
                              minval=-bound_up, maxval=bound_up)
    b_up = jax.random.uniform(k2, (hidden,), jnp.float32,
                              minval=-bound_up, maxval=bound_up)
    bound_down = 1.0 / math.sqrt(hidden)
    w_down = jax.random.uniform(k3, (hidden, d_model), jnp.float32,
                                minval=-bound_down, maxval=bound_down)
    b_down = jax.random.uniform(k4, (d_model,), jnp.float32,
                                minval=-bound_down, maxval=bound_down)

    # Reference (exact GELU) in plain JAX.
    h_ref = x.reshape(-1, d_model) @ w_up + b_up
    h_ref = 0.5 * h_ref * (1.0 + lax.erf(h_ref / math.sqrt(2.0)))
    y_ref = (h_ref @ w_down + b_down).reshape(B, S, d_model)

    # f32 MXU path (matches nn.GELU(approximate='none') numerics exactly).
    y_f32 = mpt_mlp(x, w_up, b_up, w_down, b_down, compute_dtype=jnp.float32)
    jax.block_until_ready(y_f32)
    assert jnp.allclose(y_f32, y_ref, atol=1e-5, rtol=1e-5)

    # Default path: bf16 operands on the MXU, f32 accumulation + GELU,
    # f32 output (in-place output accumulation, no scratch).
    y_bf16 = mpt_mlp(x, w_up, b_up, w_down, b_down)
    jax.block_until_ready(y_bf16)
    assert jnp.allclose(y_bf16, y_ref, atol=5e-2, rtol=5e-2)

    # bf16 activations end-to-end (exercises the scratch-accumulator kernel,
    # since the output dtype follows x and is no longer f32).
    y_act16 = mpt_mlp(x.astype(jnp.bfloat16), w_up, b_up, w_down, b_down)
    jax.block_until_ready(y_act16)
    assert jnp.allclose(y_act16.astype(jnp.float32), y_ref,
                        atol=5e-2, rtol=5e-2)

    print("KERNEL_OK")
</pallas_src>

<mosaic_0001>
module attributes {stable_mosaic.version = 11 : i64} {
  func.func @_mlp_kernel_inplace(%arg0: i32, %arg1: i32, %arg2: memref<16x128xf32, #tpu.memory_space<vmem>>, %arg3: memref<128x128xf32, #tpu.memory_space<vmem>>, %arg4: memref<1x128xf32, #tpu.memory_space<vmem>>, %arg5: memref<128x128xf32, #tpu.memory_space<vmem>>, %arg6: memref<1x128xf32, #tpu.memory_space<vmem>>, %arg7: memref<16x128xf32, #tpu.memory_space<vmem>>) attributes {dimension_semantics = [#tpu.dimension_semantics<parallel>, #tpu.dimension_semantics<arbitrary>], iteration_bounds = array<i64: 1, 1>, scalar_prefetch = 0 : i64, scratch_operands = 0 : i64, tpu.core_type = #tpu.core_type<tc>, window_params = [{pipeline_mode = #tpu.pipeline_mode<synchronous>, transform_indices = @transform_0, window_bounds = array<i64: 16, 128>}, {transform_indices = @transform_1, window_bounds = array<i64: 128, 128>}, {transform_indices = @transform_2, window_bounds = array<i64: 1, 128>}, {transform_indices = @transform_3, window_bounds = array<i64: 128, 128>}, {pipeline_mode = #tpu.pipeline_mode<synchronous>, transform_indices = @transform_4, window_bounds = array<i64: 1, 128>}, {transform_indices = @transform_5, window_bounds = array<i64: 16, 128>}]} {
    %c0_i32 = arith.constant 0 : i32
    %0 = arith.cmpi eq, %arg1, %c0_i32 : i32
    %1 = arith.extui %0 : i1 to i32
    %c0_i32_0 = arith.constant 0 : i32
    %2 = arith.cmpi ne, %1, %c0_i32_0 : i32
    scf.if %2 {
      %c0_16 = arith.constant 0 : index
      %c0_17 = arith.constant 0 : index
      %22 = vector.load %arg6[%c0_16, %c0_17] : memref<1x128xf32, #tpu.memory_space<vmem>>, vector<1x128xf32>
      %23 = vector.shape_cast %22 : vector<1x128xf32> to vector<1x128xf32>
      %24 = vector.broadcast %23 : vector<1x128xf32> to vector<16x128xf32>
      %c0_18 = arith.constant 0 : index
      %c0_19 = arith.constant 0 : index
      %25 = vector.load %arg7[%c0_18, %c0_19] : memref<16x128xf32, #tpu.memory_space<vmem>>, vector<16x128xf32>
      tpu.vector_store %arg7[%c0_18, %c0_19], %24 {strides = array<i32>} : memref<16x128xf32, #tpu.memory_space<vmem>>, vector<16x128xf32>,
    } else {
    }
    %c0 = arith.constant 0 : index
    %c0_1 = arith.constant 0 : index
    %3 = vector.load %arg2[%c0, %c0_1] : memref<16x128xf32, #tpu.memory_space<vmem>>, vector<16x128xf32>
    %c0_2 = arith.constant 0 : index
    %c0_3 = arith.constant 0 : index
    %4 = vector.load %arg3[%c0_2, %c0_3] : memref<128x128xf32, #tpu.memory_space<vmem>>, vector<128x128xf32>
    %cst = arith.constant dense<0.000000e+00> : vector<16x128xf32>
    %5 = tpu.matmul %3, %4, %cst {dimension_numbers = #tpu.dot_dimension_numbers<[1], [0], [0], [1], [0, 0, 1, 1], [], []>} : vector<16x128xf32>, vector<128x128xf32>, vector<16x128xf32> -> vector<16x128xf32>
    %c0_4 = arith.constant 0 : index
    %c0_5 = arith.constant 0 : index
    %6 = vector.load %arg4[%c0_4, %c0_5] : memref<1x128xf32, #tpu.memory_space<vmem>>, vector<1x128xf32>
    %7 = vector.broadcast %6 : vector<1x128xf32> to vector<16x128xf32>
    %8 = arith.addf %5, %7 : vector<16x128xf32>
    %cst_6 = arith.constant 5.000000e-01 : f32
    %9 = vector.broadcast %cst_6 : f32 to vector<16x128xf32>
    %10 = arith.mulf %9, %8 : vector<16x128xf32>
    %cst_7 = arith.constant 0.707106769 : f32
    %11 = vector.broadcast %cst_7 : f32 to vector<16x128xf32>
    %12 = arith.mulf %8, %11 : vector<16x128xf32>
    %13 = math.erf %12 : vector<16x128xf32>
    %cst_8 = arith.constant 1.000000e+00 : f32
    %14 = vector.broadcast %cst_8 : f32 to vector<16x128xf32>
    %15 = arith.addf %14, %13 : vector<16x128xf32>
    %16 = arith.mulf %10, %15 : vector<16x128xf32>
    %c0_9 = arith.constant 0 : index
    %c0_10 = arith.constant 0 : index
    %17 = vector.load %arg7[%c0_9, %c0_10] : memref<16x128xf32, #tpu.memory_space<vmem>>, vector<16x128xf32>
    %c0_11 = arith.constant 0 : index
    %c0_12 = arith.constant 0 : index
    %18 = vector.load %arg5[%c0_11, %c0_12] : memref<128x128xf32, #tpu.memory_space<vmem>>, vector<128x128xf32>
    %cst_13 = arith.constant dense<0.000000e+00> : vector<16x128xf32>
    %19 = tpu.matmul %16, %18, %cst_13 {dimension_numbers = #tpu.dot_dimension_numbers<[1], [0], [0], [1], [0, 0, 1, 1], [], []>} : vector<16x128xf32>, vector<128x128xf32>, vector<16x128xf32> -> vector<16x128xf32>
    %20 = arith.addf %17, %19 : vector<16x128xf32>
    %c0_14 = arith.constant 0 : index
    %c0_15 = arith.constant 0 : index
    %21 = vector.load %arg7[%c0_14, %c0_15] : memref<16x128xf32, #tpu.memory_space<vmem>>, vector<16x128xf32>
    tpu.vector_store %arg7[%c0_14, %c0_15], %20 {strides = array<i32>} : memref<16x128xf32, #tpu.memory_space<vmem>>, vector<16x128xf32>,
    return
  }
  func.func @transform_0(%arg0: i32, %arg1: i32) -> (i32, i32) {
    %c0_i32 = arith.constant 0 : i32
    %c0_i32_0 = arith.constant 0 : i32
    return %arg0, %c0_i32 : i32, i32
  }
  func.func @transform_1(%arg0: i32, %arg1: i32) -> (i32, i32) {
    %c0_i32 = arith.constant 0 : i32
    %c0_i32_0 = arith.constant 0 : i32
    return %c0_i32, %arg1 : i32, i32
  }
  func.func @transform_2(%arg0: i32, %arg1: i32) -> (i32, i32) {
    %c0_i32 = arith.constant 0 : i32
    %c0_i32_0 = arith.constant 0 : i32
    return %c0_i32, %arg1 : i32, i32
  }
  func.func @transform_3(%arg0: i32, %arg1: i32) -> (i32, i32) {
    %c0_i32 = arith.constant 0 : i32
    %c0_i32_0 = arith.constant 0 : i32
    return %arg1, %c0_i32 : i32, i32
  }
  func.func @transform_4(%arg0: i32, %arg1: i32) -> (i32, i32) {
    %c0_i32 = arith.constant 0 : i32
    %c0_i32_0 = arith.constant 0 : i32
    %c0_i32_1 = arith.constant 0 : i32
    return %c0_i32, %c0_i32_0 : i32, i32
  }
  func.func @transform_5(%arg0: i32, %arg1: i32) -> (i32, i32) {
    %c0_i32 = arith.constant 0 : i32
    %c0_i32_0 = arith.constant 0 : i32
    return %arg0, %c0_i32 : i32, i32
  }
}

</mosaic_0001>

<llo_original>
// kernel: tpu_custom_call.1
$region0: #{tpu_custom_call.1}
  #allocation0 [shape = 'u32[]', space=smem, size = 0x4, offset = 0x4, fixed_abs, tag = 'smem constant byte address 0x4 - core index']
  #allocation1 [shape = 'u32[144,128]{1,0:T(1,128)}', space=vmem, size = 0x12000, scoped, tag = 'internal scratch']
  %s0 = inlined_call_operand.hbm [shape: f32[16,128], index: 0, kind: input, shape index: {}]
  %s1 = inlined_call_operand.hbm [shape: f32[128,128], index: 1, kind: input, shape index: {}]
  %s2 = inlined_call_operand.vmem [shape: f32[1,128], index: 2, kind: input, shape index: {}]
  %s3 = inlined_call_operand.hbm [shape: f32[128,128], index: 3, kind: input, shape index: {}]
  %s4 = inlined_call_operand.vmem [shape: f32[1,128], index: 4, kind: input, shape index: {}]
  %s5 = inlined_call_operand.hbm [shape: f32[16,128], index: 5, kind: output, shape index: {}]
  %s6 = sld [smem:[#allocation0]]
  $region46: #{tpu_custom_call.1} parent=0
    _
  %s8 = ssub.s32 1, %s6
  %s9 = scalar_select 0, %s8, %s6
  $region1: #{tpu_custom_call.1} parent=0
    #allocation2 [shape = 'u8[8192]{0}', space=vmem, size = 0x2000, scoped, tag = 'input window, operand 0, single buffered']
    #allocation3 [shape = 's32[1]{0}', space=sflag, size = 0x4, scoped, tag = 'scoped memory for tpu_custom_call.1']
    #allocation4 [shape = 's32[1]{0}', space=sflag, size = 0x4, scoped, tag = 'scoped memory for tpu_custom_call.1']
    #allocation5 [shape = 'u8[65536]{0}', space=vmem, size = 0x10000, scoped, tag = 'input window, operand 1, single buffered']
    #allocation6 [shape = 's32[1]{0}', space=sflag, size = 0x4, scoped, tag = 'scoped memory for tpu_custom_call.1']
    #allocation7 [shape = 'u8[65536]{0}', space=vmem, size = 0x10000, scoped, tag = 'input window, operand 3, single buffered']
    #allocation8 [shape = 'u8[8192]{0}', space=vmem, size = 0x2000, scoped, tag = 'output window, operand 0, single buffered']
    %10 = vsyncpa [#allocation3], 0
    %11 = vsyncpa [#allocation6], 0
    %12 = vsyncpa [#allocation4], 0
    // Predicated region
    $region2: #{tpu_custom_call.1} parent=1 // pred_check
      _
    $region3: #{tpu_custom_call.1} parent=1 // pred_check_branch
      %14 = sbr.rel (0) target = $region5
    $region4: #{tpu_custom_call.1} parent=1 // pred_region
      %s16 = ssub.s32 256, 256
      %17 = vsyncadd [#allocation3], %s16
      %s18 = sshll.u32 [#allocation2], 4
      %s19 = int_to_ptr.vmem [resolvable:$true] %s18
      %24 = dma.hbm_to_vmem [thread:$0]  %s0, 256, %s19, [#allocation3], 128, 128, 8
    $region5: #{tpu_custom_call.1} parent=1 // pred_fallthru
      _
    // Predicated region
    $region6: #{tpu_custom_call.1} parent=1 // pred_check
      _
    $region7: #{tpu_custom_call.1} parent=1 // pred_check_branch
      %26 = sbr.rel (0) target = $region9
    $region8: #{tpu_custom_call.1} parent=1 // pred_region
      %s28 = ssub.s32 2048, 2048
      %29 = vsyncadd [#allocation6], %s28
      %s30 = sshll.u32 [#allocation5], 4
      %s31 = int_to_ptr.vmem [resolvable:$true] %s30
      %36 = dma.hbm_to_vmem [thread:$0]  %s1, 2048, %s31, [#allocation6], 128, 128, 8
    $region9: #{tpu_custom_call.1} parent=1 // pred_fallthru
      _
    // Predicated region
    $region10: #{tpu_custom_call.1} parent=1 // pred_check
      _
    $region11: #{tpu_custom_call.1} parent=1 // pred_check_branch
      %38 = sbr.rel (0) target = $region13
    $region12: #{tpu_custom_call.1} parent=1 // pred_region
      _
    $region13: #{tpu_custom_call.1} parent=1 // pred_fallthru
      _
    // Predicated region
    $region14: #{tpu_custom_call.1} parent=1 // pred_check
      _
    $region15: #{tpu_custom_call.1} parent=1 // pred_check_branch
      %40 = sbr.rel (0) target = $region17
    $region16: #{tpu_custom_call.1} parent=1 // pred_region
      %s42 = ssub.s32 2048, 2048
      %43 = vsyncadd [#allocation6], %s42
      %s44 = sshll.u32 [#allocation7], 4
      %s45 = int_to_ptr.vmem [resolvable:$true] %s44
      %50 = dma.hbm_to_vmem [thread:$0]  %s3, 2048, %s45, [#allocation6], 128, 128, 8
    $region17: #{tpu_custom_call.1} parent=1 // pred_fallthru
      _
    // Predicated region
    $region18: #{tpu_custom_call.1} parent=1 // pred_check
      _
    $region19: #{tpu_custom_call.1} parent=1 // pred_check_branch
      %52 = sbr.rel (0) target = $region21
    $region20: #{tpu_custom_call.1} parent=1 // pred_region
      _
    $region21: #{tpu_custom_call.1} parent=1 // pred_fallthru
      _
    // Predicated region
    $region22: #{tpu_custom_call.1} parent=1 // pred_check
      _
    $region23: #{tpu_custom_call.1} parent=1 // pred_check_branch
      %54 = sbr.rel (0) target = $region25
    $region24: #{tpu_custom_call.1} parent=1 // pred_region
      %55 = dma.done [#allocation3], 256
    $region25: #{tpu_custom_call.1} parent=1 // pred_fallthru
      _
    // Predicated region
    $region26: #{tpu_custom_call.1} parent=1 // pred_check
      _
    $region27: #{tpu_custom_call.1} parent=1 // pred_check_branch
      %57 = sbr.rel (0) target = $region29
    $region28: #{tpu_custom_call.1} parent=1 // pred_region
      %58 = dma.done [#allocation6], 2048
    $region29: #{tpu_custom_call.1} parent=1 // pred_fallthru
      _
    // Predicated region
    $region30: #{tpu_custom_call.1} parent=1 // pred_check
      _
    $region31: #{tpu_custom_call.1} parent=1 // pred_check_branch
      %60 = sbr.rel (0) target = $region33
    $region32: #{tpu_custom_call.1} parent=1 // pred_region
      %61 = dma.done [#allocation6], 2048
    $region33: #{tpu_custom_call.1} parent=1 // pred_fallthru
      _
    %p62 = scmp.eq.s32.totalorder 0, 0
    // Predicated region
    $region34: #{tpu_custom_call.1} parent=1 // pred_check
      %p63 = pneg %p62
    $region35: #{tpu_custom_call.1} parent=1 // pred_check_branch
      %65 = sbr.rel (%p63) target = $region37
    $region36: #{tpu_custom_call.1} parent=1 // pred_region
      %v66 = vld [vmem:[%s4] sm:$0x1]
      %v68 = vlaneseq
      %v69 = vshrl.u32 %v68, 7
      %v70 = vsub.s32 0, %v69
      %v71 = vrot.slane %v66, %v70
      %73 = vst [vmem:[#allocation8] sm:$0xff] %v71
      %74 = vst [vmem:[#allocation8 + $0x8] sm:$0xff] %v71
    $region37: #{tpu_custom_call.1} parent=1 // pred_fallthru
      _
    %v75 = vld [vmem:[#allocation2] sm:$0xff]
    %v76 = vld [vmem:[#allocation2 + $0x8] sm:$0xff]
    %v77 = vld [vmem:[#allocation5] sm:$0xff]
    %v78 = vld [vmem:[#allocation5 + $0x8] sm:$0xff]
    %v79 = vld [vmem:[#allocation5 + $0x10] sm:$0xff]
    %v80 = vld [vmem:[#allocation5 + $0x18] sm:$0xff]
    %v81 = vld [vmem:[#allocation5 + $0x20] sm:$0xff]
    %v82 = vld [vmem:[#allocation5 + $0x28] sm:$0xff]
    %v83 = vld [vmem:[#allocation5 + $0x30] sm:$0xff]
    %v84 = vld [vmem:[#allocation5 + $0x38] sm:$0xff]
    %v85 = vld [vmem:[#allocation5 + $0x40] sm:$0xff]
    %v86 = vld [vmem:[#allocation5 + $0x48] sm:$0xff]
    %v87 = vld [vmem:[#allocation5 + $0x50] sm:$0xff]
    %v88 = vld [vmem:[#allocation5 + $0x58] sm:$0xff]
    %v89 = vld [vmem:[#allocation5 + $0x60] sm:$0xff]
    %v90 = vld [vmem:[#allocation5 + $0x68] sm:$0xff]
    %v91 = vld [vmem:[#allocation5 + $0x70] sm:$0xff]
    %v92 = vld [vmem:[#allocation5 + $0x78] sm:$0xff]
    %v93 = vld [vmem:[%s2] sm:$0x1]
    %v95 = vlaneseq
    %v96 = vshrl.u32 %v95, 7
    %v97 = vsub.s32 0, %v96
    %v98 = vrot.slane %v93, %v97
    %100 = vmatprep.subr.mxu0 0.0
    %101 = vmatpush1.msra.mxu0 %v77
    %102 = vmatprep.subr.mxu0 0.0
    %103 = vmatpush1.msra.mxu0 %v78
    %104 = vmatprep.subr.mxu0 0.0
    %105 = vmatpush1.msra.mxu0 %v79
    %106 = vmatprep.subr.mxu0 0.0
    %107 = vmatpush1.msra.mxu0 %v80
    %108 = vmatprep.subr.mxu0 0.0
    %109 = vmatpush1.msra.mxu0 %v81
    %110 = vmatprep.subr.mxu0 0.0
    %111 = vmatpush1.msra.mxu0 %v82
    %112 = vmatprep.subr.mxu0 0.0
    %113 = vmatpush1.msra.mxu0 %v83
    %114 = vmatprep.subr.mxu0 0.0
    %115 = vmatpush1.msra.mxu0 %v84
    %116 = vmatprep.subr.mxu0 0.0
    %117 = vmatpush1.msra.mxu0 %v85
    %118 = vmatprep.subr.mxu0 0.0
    %119 = vmatpush1.msra.mxu0 %v86
    %120 = vmatprep.subr.mxu0 0.0
    %121 = vmatpush1.msra.mxu0 %v87
    %122 = vmatprep.subr.mxu0 0.0
    %123 = vmatpush1.msra.mxu0 %v88
    %124 = vmatprep.subr.mxu0 0.0
    %125 = vmatpush1.msra.mxu0 %v89
    %126 = vmatprep.subr.mxu0 0.0
    %127 = vmatpush1.msra.mxu0 %v90
    %128 = vmatprep.subr.mxu0 0.0
    %129 = vmatpush1.msra.mxu0 %v91
    %130 = vmatprep.subr.mxu0 0.0
    %131 = vmatpush1.msra.mxu0 %v92
    %132 = vmatprep.subr.mxu0 0.0
    %133 = vmatpush1.msra.mxu0 0.0
    %134 = vmatprep.subr.mxu0 0.0
    %135 = vmatpush1.msra.mxu0 0.0
    %136 = vmatprep.subr.mxu0 0.0
    %137 = vmatpush1.msra.mxu0 0.0
    %138 = vmatprep.subr.mxu0 0.0
    %139 = vmatpush1.msra.mxu0 0.0
    %140 = vmatprep.subr.mxu0 0.0
    %141 = vmatpush1.msra.mxu0 0.0
    %142 = vmatprep.subr.mxu0 0.0
    %143 = vmatpush1.msra.mxu0 0.0
    %144 = vmatprep.subr.mxu0 0.0
    %145 = vmatpush1.msra.mxu0 0.0
    %146 = vmatprep.subr.mxu0 0.0
    %147 = vmatpush1.msra.mxu0 0.0
    %148 = vmatprep.subr.mxu0 0.0
    %149 = vmatpush1.msra.mxu0 0.0
    %150 = vmatprep.subr.mxu0 0.0
    %151 = vmatpush1.msra.mxu0 0.0
    %152 = vmatprep.subr.mxu0 0.0
    %153 = vmatpush1.msra.mxu0 0.0
    %154 = vmatprep.subr.mxu0 0.0
    %155 = vmatpush1.msra.mxu0 0.0
    %156 = vmatprep.subr.mxu0 0.0
    %157 = vmatpush1.msra.mxu0 0.0
    %158 = vmatprep.subr.mxu0 0.0
    %159 = vmatpush1.msra.mxu0 0.0
    %160 = vmatprep.subr.mxu0 0.0
    %161 = vmatpush1.msra.mxu0 0.0
    %162 = vmatprep.subr.mxu0 0.0
    %163 = vmatpush1.msra.mxu0 0.0
    %164 = vmatprep.mubr.f32.mxu0 0.0
    %165 = vmatmul.mubr.f32.gmra.mrb[0].mxu0 %v75
    %v166 = vpop.f32.mrb[0].mxu0
    %v167 = vadd.f32 %v98, %v166
    %v168 = vpop.f32.mrb[0].mxu0
    %169 = vmatprep.mubr.f32.mxu0 0.0
    %170 = vmatmul.mubr.f32.gmra.mrb[0].mxu0 %v76
    %v171 = vpop.f32.mrb[0].mxu0
    %v172 = vadd.f32 %v98, %v171
    %v173 = vpop.f32.mrb[0].mxu0
    %174 = vdwg.mxu0
    %v175 = vmul.f32 %v167, 0.5
    %v176 = vmul.f32 %v172, 0.5
    %v177 = vmul.f32 %v167, 0.70710677
    %v178 = vmul.f32 %v172, 0.70710677
    %v179 = verf.f32.pop %v177
    %v180 = verf.f32.pop %v178
    %v181 = vadd.f32 %v179, 1.0
    %v182 = vadd.f32 %v180, 1.0
    %v183 = vmul.f32 %v175, %v181
    %v184 = vmul.f32 %v176, %v182
    %v185 = vld [vmem:[#allocation8] sm:$0xff]
    %v186 = vld [vmem:[#allocation8 + $0x8] sm:$0xff]
    %v187 = vld [vmem:[#allocation7] sm:$0xff]
    %v188 = vld [vmem:[#allocation7 + $0x8] sm:$0xff]
    %v189 = vld [vmem:[#allocation7 + $0x10] sm:$0xff]
    %v190 = vld [vmem:[#allocation7 + $0x18] sm:$0xff]
    %v191 = vld [vmem:[#allocation7 + $0x20] sm:$0xff]
    %v192 = vld [vmem:[#allocation7 + $0x28] sm:$0xff]
    %v193 = vld [vmem:[#allocation7 + $0x30] sm:$0xff]
    %v194 = vld [vmem:[#allocation7 + $0x38] sm:$0xff]
    %v195 = vld [vmem:[#allocation7 + $0x40] sm:$0xff]
    %v196 = vld [vmem:[#allocation7 + $0x48] sm:$0xff]
    %v197 = vld [vmem:[#allocation7 + $0x50] sm:$0xff]
    %v198 = vld [vmem:[#allocation7 + $0x58] sm:$0xff]
    %v199 = vld [vmem:[#allocation7 + $0x60] sm:$0xff]
    %v200 = vld [vmem:[#allocation7 + $0x68] sm:$0xff]
    %v201 = vld [vmem:[#allocation7 + $0x70] sm:$0xff]
    %v202 = vld [vmem:[#allocation7 + $0x78] sm:$0xff]
    %203 = vmatprep.subr.mxu0 0.0
    %204 = vmatpush1.msra.mxu0 %v187
    %205 = vmatprep.subr.mxu0 0.0
    %206 = vmatpush1.msra.mxu0 %v188
    %207 = vmatprep.subr.mxu0 0.0
    %208 = vmatpush1.msra.mxu0 %v189
    %209 = vmatprep.subr.mxu0 0.0
    %210 = vmatpush1.msra.mxu0 %v190
    %211 = vmatprep.subr.mxu0 0.0
    %212 = vmatpush1.msra.mxu0 %v191
    %213 = vmatprep.subr.mxu0 0.0
    %214 = vmatpush1.msra.mxu0 %v192
    %215 = vmatprep.subr.mxu0 0.0
    %216 = vmatpush1.msra.mxu0 %v193
    %217 = vmatprep.subr.mxu0 0.0
    %218 = vmatpush1.msra.mxu0 %v194
    %219 = vmatprep.subr.mxu0 0.0
    %220 = vmatpush1.msra.mxu0 %v195
    %221 = vmatprep.subr.mxu0 0.0
    %222 = vmatpush1.msra.mxu0 %v196
    %223 = vmatprep.subr.mxu0 0.0
    %224 = vmatpush1.msra.mxu0 %v197
    %225 = vmatprep.subr.mxu0 0.0
    %226 = vmatpush1.msra.mxu0 %v198
    %227 = vmatprep.subr.mxu0 0.0
    %228 = vmatpush1.msra.mxu0 %v199
    %229 = vmatprep.subr.mxu0 0.0
    %230 = vmatpush1.msra.mxu0 %v200
    %231 = vmatprep.subr.mxu0 0.0
    %232 = vmatpush1.msra.mxu0 %v201
    %233 = vmatprep.subr.mxu0 0.0
    %234 = vmatpush1.msra.mxu0 %v202
    %235 = vmatprep.subr.mxu0 0.0
    %236 = vmatpush1.msra.mxu0 0.0
    %237 = vmatprep.subr.mxu0 0.0
    %238 = vmatpush1.msra.mxu0 0.0
    %239 = vmatprep.subr.mxu0 0.0
    %240 = vmatpush1.msra.mxu0 0.0
    %241 = vmatprep.subr.mxu0 0.0
    %242 = vmatpush1.msra.mxu0 0.0
    %243 = vmatprep.subr.mxu0 0.0
    %244 = vmatpush1.msra.mxu0 0.0
    %245 = vmatprep.subr.mxu0 0.0
    %246 = vmatpush1.msra.mxu0 0.0
    %247 = vmatprep.subr.mxu0 0.0
    %248 = vmatpush1.msra.mxu0 0.0
    %249 = vmatprep.subr.mxu0 0.0
    %250 = vmatpush1.msra.mxu0 0.0
    %251 = vmatprep.subr.mxu0 0.0
    %252 = vmatpush1.msra.mxu0 0.0
    %253 = vmatprep.subr.mxu0 0.0
    %254 = vmatpush1.msra.mxu0 0.0
    %255 = vmatprep.subr.mxu0 0.0
    %256 = vmatpush1.msra.mxu0 0.0
    %257 = vmatprep.subr.mxu0 0.0
    %258 = vmatpush1.msra.mxu0 0.0
    %259 = vmatprep.subr.mxu0 0.0
    %260 = vmatpush1.msra.mxu0 0.0
    %261 = vmatprep.subr.mxu0 0.0
    %262 = vmatpush1.msra.mxu0 0.0
    %263 = vmatprep.subr.mxu0 0.0
    %264 = vmatpush1.msra.mxu0 0.0
    %265 = vmatprep.subr.mxu0 0.0
    %266 = vmatpush1.msra.mxu0 0.0
    %267 = vmatprep.mubr.f32.mxu0 0.0
    %268 = vmatmul.mubr.f32.gmra.mrb[0].mxu0 %v183
    %v269 = vpop.f32.mrb[0].mxu0
    %v270 = vadd.f32 0.0, %v269
    %v271 = vpop.f32.mrb[0].mxu0
    %272 = vmatprep.mubr.f32.mxu0 0.0
    %273 = vmatmul.mubr.f32.gmra.mrb[0].mxu0 %v184
    %v274 = vpop.f32.mrb[0].mxu0
    %v275 = vadd.f32 0.0, %v274
    %v276 = vpop.f32.mrb[0].mxu0
    %277 = vdwg.mxu0
    %v278 = vadd.f32 %v185, %v270
    %v279 = vadd.f32 %v186, %v275
    %280 = vst [vmem:[#allocation8] sm:$0xff] %v278
    %281 = vst [vmem:[#allocation8 + $0x8] sm:$0xff] %v279
    // Predicated region
    $region38: #{tpu_custom_call.1} parent=1 // pred_check
      _
    $region39: #{tpu_custom_call.1} parent=1 // pred_check_branch
      %283 = sbr.rel (0) target = $region41
    $region40: #{tpu_custom_call.1} parent=1 // pred_region
      %s285 = ssub.s32 256, 256
      %286 = vsyncadd [#allocation4], %s285
      %s287 = sshll.u32 [#allocation8], 4
      %s288 = int_to_ptr.vmem [resolvable:$true] %s287
      %293 = dma.vmem_to_hbm [thread:$0]  %s288, 256, %s5, [#allocation4], 128, 128, 8
    $region41: #{tpu_custom_call.1} parent=1 // pred_fallthru
      _
    // Predicated region
    $region42: #{tpu_custom_call.1} parent=1 // pred_check
      _
    $region43: #{tpu_custom_call.1} parent=1 // pred_check_branch
      %295 = sbr.rel (0) target = $region45
    $region44: #{tpu_custom_call.1} parent=1 // pred_region
      %296 = dma.done [#allocation4], 256
    $region45: #{tpu_custom_call.1} parent=1 // pred_fallthru
      _
    %297 = vsyncpa [#allocation3], 1
    %298 = vsyncpa [#allocation6], 1
    %299 = vsyncpa [#allocation4], 1

</llo_original>
